<compile_context>
chip_gen: v7x
topology: tpu7x:2x2x1
jax: 0.10.0
libtpu: 0.0.40
codegen_flags: <defaults>
</compile_context>

<pallas_src>
import functools
import math

import jax
import jax.numpy as jnp
from jax import lax
from jax.experimental import pallas as pl
from jax.experimental.pallas import tpu as pltpu


def _xlogy_const(a):
    return 0.0 if a <= 0.0 else a * math.log(a)


def _round_up(a, b):
    return -(-a // b) * b


@functools.lru_cache(maxsize=None)
def _vmem_plan():
    """(per-input-buffer budget bytes, scoped vmem limit bytes) per TPU generation."""
    cap = 64 * 1024 * 1024  # conservative default (v7x-class)
    try:
        cap = int(getattr(pltpu.get_tpu_info(), "vmem_capacity_bytes", cap) or cap)
    except Exception:
        pass
    if cap <= 64 * 1024 * 1024:                  # v7x: 64 MiB per TensorCore
        return 2 * 1024 * 1024, 32 * 1024 * 1024
    return 4 * 1024 * 1024, 64 * 1024 * 1024     # v5e / v6e: 128 MiB


def _choose_tiles(n_rows, vocab, itemsize, per_buf_budget):
    """Pick (tile_n, tile_v): lane dim multiple of 128, sublane dim multiple of 8,
    sized so one pipelined input block stays within the per-buffer budget."""
    tile_v = min(_round_up(vocab, 128), 4096)
    tile_n = per_buf_budget // (tile_v * itemsize)
    tile_n = max(8, min(1024, (tile_n // 8) * 8))
    tile_n = min(tile_n, _round_up(n_rows, 8))
    return tile_n, tile_v


def _make_kernel(*, off, on_w, ignore_index, n_rows, vocab, tile_n, tile_v):
    need_ignore = ignore_index is not None
    need_row_range = (n_rows % tile_n) != 0     # ragged last row tile
    need_col_mask = (vocab % tile_v) != 0       # ragged last vocab tile
    n_lane_groups = tile_v // 128

    def _fold(a):
        """(tile_n, tile_v) f32 -> (1, 128): fold 128-lane groups with static,
        tile-aligned slices (pure elementwise vreg adds), then reduce sublanes."""
        acc = a[:, 0:128]
        for c in range(1, n_lane_groups):
            acc = acc + a[:, c * 128:(c + 1) * 128]
        return jnp.sum(acc, axis=0, keepdims=True)

    def kernel(x_ref, tgt_ref, out_ref):
        i = pl.program_id(0)   # row-tile axis ("parallel": megacore-shardable)
        j = pl.program_id(1)   # vocab-tile axis (inner, sequential reduction)

        @pl.when(j == 0)
        def _():
            out_ref[...] = jnp.zeros_like(out_ref)

        tgt = tgt_ref[...]                                         # (tile_n, 1) int32
        # One log per element; f32 for accumulation accuracy (see TODO in header).
        logp = jnp.log(x_ref[...].astype(jnp.float32))             # (tile_n, tile_v)

        # Masks: cheap (tile_n,1)/(1,tile_v) predicates, statically elided when not
        # needed; at most one full-tile select touches the hot path.
        row_ok = None
        if need_ignore:
            row_ok = tgt != ignore_index
        if need_row_range:
            in_range = (lax.broadcasted_iota(jnp.int32, (tile_n, 1), 0)
                        < n_rows - i * tile_n)
            row_ok = in_range if row_ok is None else jnp.logical_and(row_ok, in_range)

        col_local = lax.broadcasted_iota(jnp.int32, (1, tile_v), 1)
        mask = row_ok
        if need_col_mask:
            col_ok = col_local < (vocab - j * tile_v)
            mask = col_ok if mask is None else jnp.logical_and(mask, col_ok)

        # Select (not multiply) so -inf/NaN logp in masked rows/padding never leaks.
        logp_m = logp if mask is None else jnp.where(mask, logp, 0.0)

        # Data-dependent part of the loss:  off * sum_v logp  +  (1 - s) * logp[tgt].
        # Scalars applied after the reductions (scale only a (1,128) vector).
        parts = []
        if off != 0.0:
            parts.append(off * _fold(logp_m))
        if on_w != 0.0:
            hit = col_local == (tgt - j * tile_v)                  # broadcast compare
            parts.append(on_w * _fold(jnp.where(hit, logp_m, 0.0)))
        if parts:
            partial = parts[0]
            for p in parts[1:]:
                partial = partial + p
            out_ref[...] -= partial[None]                          # (1, 1, 128)

    return kernel


@functools.partial(jax.jit, static_argnames=("smoothing", "ignore_index"))
def label_smoothing_loss(inputs, targets, norm=1.0, *, smoothing=0.0, ignore_index=None):
    """Pallas TPU equivalent of LabelSmoothing.forward(inputs, targets, norm)."""
    B, L, V = inputs.shape
    N = B * L
    x = inputs.reshape(N, V)                       # native dtype, no copy, no padding
    tgt = targets.reshape(N, 1).astype(jnp.int32)
    norm_f = jnp.asarray(norm, jnp.float32)

    if smoothing == 0.0:
        # Fast path: only logp at the target column is needed -> gather N elements
        # instead of streaming N*V.  Plain XLA gather (a Pallas gather kernel would pay
        # per-row grid overhead for no benefit at these sizes).
        lp = jnp.log(jnp.take_along_axis(x, tgt, axis=-1).astype(jnp.float32))[:, 0]
        if ignore_index is not None:
            lp = jnp.where(tgt[:, 0] == ignore_index, 0.0, lp)
        return -jnp.sum(lp) / norm_f

    per_buf_budget, vmem_limit = _vmem_plan()
    tile_n, tile_v = _choose_tiles(N, V, jnp.dtype(x.dtype).itemsize, per_buf_budget)
    grid = (pl.cdiv(N, tile_n), pl.cdiv(V, tile_v))

    off = smoothing / V
    on_w = 1.0 - smoothing
    const_c = _xlogy_const(on_w + off) + (V - 1) * _xlogy_const(off)

    kernel = _make_kernel(off=off, on_w=on_w, ignore_index=ignore_index,
                          n_rows=N, vocab=V, tile_n=tile_n, tile_v=tile_v)

    partials = pl.pallas_call(
        kernel,
        out_shape=jax.ShapeDtypeStruct((grid[0], 1, 128), jnp.float32),
        grid_spec=pltpu.PrefetchScalarGridSpec(
            num_scalar_prefetch=0,
            grid=grid,
            in_specs=[
                pl.BlockSpec((tile_n, tile_v), lambda i, j: (i, j)),
                pl.BlockSpec((tile_n, 1), lambda i, j: (i, 0)),
            ],
            # Disjoint per-row-tile, lane-dense partials (constant over j -> resident
            # accumulator across the vocab reduction; parallel-safe over i).
            out_specs=pl.BlockSpec((1, 1, 128), lambda i, j: (i, 0, 0)),
        ),
        compiler_params=pltpu.CompilerParams(
            dimension_semantics=("parallel", "arbitrary"),
            vmem_limit_bytes=vmem_limit),
    )(x, tgt)

    # Constant sum_v xlogy(t, t) term, added once per non-ignored row (wrapper-side).
    if ignore_index is not None:
        n_valid = jnp.sum((tgt[:, 0] != ignore_index).astype(jnp.float32))
    else:
        n_valid = jnp.asarray(N, jnp.float32)
    total = const_c * n_valid + jnp.sum(partials)
    return total / norm_f


def _reference_loss(inputs, targets, norm, smoothing, ignore_index):
    """Pure-JAX reference mirroring the PyTorch module, for verification."""
    V = inputs.shape[-1]
    logp = jnp.log(inputs.astype(jnp.float32)).reshape(-1, V)
    tgt = targets.reshape(-1)
    onehot = jax.nn.one_hot(tgt, V, dtype=jnp.float32)
    t = onehot * (1.0 - smoothing) + smoothing / V
    xlogy_t = jnp.where(t > 0, t * jnp.log(jnp.where(t > 0, t, 1.0)), 0.0)
    loss = jnp.sum(xlogy_t - t * logp, axis=-1)
    if ignore_index is not None:
        loss = jnp.where(tgt == ignore_index, 0.0, loss)
    return jnp.sum(loss) / norm


if __name__ == "__main__":
    key = jax.random.PRNGKey(0)
    k1, k2, k3, k4, k5, k6, k7, k8 = jax.random.split(key, 8)

    # Case 1: f32, smoothing + ignore_index, exactly-tiled shapes.
    B, L, V = 2, 8, 256
    smoothing, ignore_index = 0.1, 0
    norm = float(B * L)
    inputs = jax.nn.softmax(jax.random.normal(k1, (B, L, V), jnp.float32), axis=-1)
    targets = jax.random.randint(k2, (B, L), 0, V, dtype=jnp.int32)
    loss = jax.block_until_ready(
        label_smoothing_loss(inputs, targets, norm,
                             smoothing=smoothing, ignore_index=ignore_index))
    ref = _reference_loss(inputs, targets, norm, smoothing, ignore_index)
    assert jnp.allclose(loss, ref, rtol=1e-4, atol=1e-4), (loss, ref)

    # Case 2: bf16, smoothing, no ignore_index, ragged rows & vocab (masked paths).
    B2, L2, V2 = 3, 7, 300
    norm2 = float(B2 * L2)
    inputs2 = jax.nn.softmax(jax.random.normal(k3, (B2, L2, V2), jnp.float32),
                             axis=-1).astype(jnp.bfloat16)
    targets2 = jax.random.randint(k4, (B2, L2), 0, V2, dtype=jnp.int32)
    loss2 = jax.block_until_ready(
        label_smoothing_loss(inputs2, targets2, norm2, smoothing=0.05, ignore_index=None))
    ref2 = _reference_loss(inputs2, targets2, norm2, 0.05, None)
    assert jnp.allclose(loss2, ref2, rtol=1e-4, atol=1e-4), (loss2, ref2)

    # Case 3: f32, larger vocab -> multiple vocab tiles (tests the j-axis accumulation
    # into the resident per-row-tile partial) with a ragged last vocab tile.
    B3, L3, V3 = 2, 8, 5000
    norm3 = float(B3 * L3)
    inputs3 = jax.nn.softmax(jax.random.normal(k5, (B3, L3, V3), jnp.float32), axis=-1)
    targets3 = jax.random.randint(k6, (B3, L3), 0, V3, dtype=jnp.int32)
    loss3 = jax.block_until_ready(
        label_smoothing_loss(inputs3, targets3, norm3, smoothing=0.1, ignore_index=None))
    ref3 = _reference_loss(inputs3, targets3, norm3, 0.1, None)
    assert jnp.allclose(loss3, ref3, rtol=1e-4, atol=1e-4), (loss3, ref3)

    # Case 4: smoothing == 0 fast path (gather of logp[target] only).
    B4, L4, V4 = 2, 8, 256
    norm4 = float(B4 * L4)
    inputs4 = jax.nn.softmax(jax.random.normal(k7, (B4, L4, V4), jnp.float32), axis=-1)
    targets4 = jax.random.randint(k8, (B4, L4), 0, V4, dtype=jnp.int32)
    loss4 = jax.block_until_ready(
        label_smoothing_loss(inputs4, targets4, norm4, smoothing=0.0, ignore_index=0))
    ref4 = _reference_loss(inputs4, targets4, norm4, 0.0, 0)
    assert jnp.allclose(loss4, ref4, rtol=1e-4, atol=1e-4), (loss4, ref4)

    print("KERNEL_OK")
</pallas_src>

<mosaic_0001>
module attributes {stable_mosaic.version = 11 : i64} {
  func.func @kernel(%arg0: i32, %arg1: i32, %arg2: memref<16x256xf32, #tpu.memory_space<vmem>>, %arg3: memref<16x1xi32, #tpu.memory_space<vmem>>, %arg4: memref<1x1x128xf32, #tpu.memory_space<vmem>>) attributes {dimension_semantics = [#tpu.dimension_semantics<parallel>, #tpu.dimension_semantics<arbitrary>], iteration_bounds = array<i64: 1, 1>, scalar_prefetch = 0 : i64, scratch_operands = 0 : i64, tpu.core_type = #tpu.core_type<tc>, window_params = [{transform_indices = @transform_0, window_bounds = array<i64: 16, 256>}, {transform_indices = @transform_1, window_bounds = array<i64: 16, 1>}, {transform_indices = @transform_2, window_bounds = array<i64: 1, 1, 128>}]} {
    %c0_i32 = arith.constant 0 : i32
    %0 = arith.cmpi eq, %arg1, %c0_i32 : i32
    %1 = arith.extui %0 : i1 to i32
    %c0_i32_0 = arith.constant 0 : i32
    %2 = arith.cmpi ne, %1, %c0_i32_0 : i32
    scf.if %2 {
      %cst_16 = arith.constant 0.000000e+00 : f32
      %40 = vector.broadcast %cst_16 : f32 to vector<1x1x128xf32>
      %c0_17 = arith.constant 0 : index
      %c0_18 = arith.constant 0 : index
      %c0_19 = arith.constant 0 : index
      %41 = vector.load %arg4[%c0_17, %c0_18, %c0_19] : memref<1x1x128xf32, #tpu.memory_space<vmem>>, vector<1x1x128xf32>
      tpu.vector_store %arg4[%c0_17, %c0_18, %c0_19], %40 {strides = array<i32>} : memref<1x1x128xf32, #tpu.memory_space<vmem>>, vector<1x1x128xf32>,
    } else {
    }
    %c0 = arith.constant 0 : index
    %c0_1 = arith.constant 0 : index
    %3 = vector.load %arg3[%c0, %c0_1] : memref<16x1xi32, #tpu.memory_space<vmem>>, vector<16x1xi32>
    %c0_2 = arith.constant 0 : index
    %c0_3 = arith.constant 0 : index
    %4 = vector.load %arg2[%c0_2, %c0_3] : memref<16x256xf32, #tpu.memory_space<vmem>>, vector<16x256xf32>
    %5 = math.log %4 : vector<16x256xf32>
    %c0_i32_4 = arith.constant 0 : i32
    %6 = vector.broadcast %c0_i32_4 : i32 to vector<16x1xi32>
    %7 = arith.cmpi ne, %3, %6 : vector<16x1xi32>
    %8 = tpu.iota {dimensions = array<i32: 1>} : vector<1x256xi32>
    %cst = arith.constant 0.000000e+00 : f32
    %9 = vector.shape_cast %7 : vector<16x1xi1> to vector<16x1xi1>
    %10 = vector.broadcast %9 : vector<16x1xi1> to vector<16x256xi1>
    %11 = vector.broadcast %cst : f32 to vector<16x256xf32>
    %12 = arith.select %10, %5, %11 : vector<16x256xi1>, vector<16x256xf32>
    %13 = vector.extract_strided_slice %12 {offsets = [0, 0], sizes = [16, 128], strides = [1, 1]} : vector<16x256xf32> to vector<16x128xf32>
    %14 = vector.extract_strided_slice %12 {offsets = [0, 128], sizes = [16, 128], strides = [1, 1]} : vector<16x256xf32> to vector<16x128xf32>
    %15 = arith.addf %13, %14 : vector<16x128xf32>
    %cst_5 = arith.constant dense<0.000000e+00> : vector<128xf32>
    %16 = vector.multi_reduction <add>, %15, %cst_5 [0] : vector<16x128xf32> to vector<128xf32>
    %17 = vector.shape_cast %16 : vector<128xf32> to vector<1x128xf32>
    %cst_6 = arith.constant 3.906250e-04 : f32
    %18 = vector.broadcast %cst_6 : f32 to vector<1x128xf32>
    %19 = arith.mulf %18, %17 : vector<1x128xf32>
    %c256_i32 = arith.constant 256 : i32
    %20 = arith.muli %arg1, %c256_i32 : i32
    %21 = vector.broadcast %20 : i32 to vector<16x1xi32>
    %22 = arith.subi %3, %21 : vector<16x1xi32>
    %23 = vector.broadcast %8 : vector<1x256xi32> to vector<16x256xi32>
    %24 = vector.broadcast %22 : vector<16x1xi32> to vector<16x256xi32>
    %25 = arith.cmpi eq, %23, %24 : vector<16x256xi32>
    %cst_7 = arith.constant 0.000000e+00 : f32
    %26 = vector.broadcast %cst_7 : f32 to vector<16x256xf32>
    %27 = arith.select %25, %12, %26 : vector<16x256xi1>, vector<16x256xf32>
    %28 = vector.extract_strided_slice %27 {offsets = [0, 0], sizes = [16, 128], strides = [1, 1]} : vector<16x256xf32> to vector<16x128xf32>
    %29 = vector.extract_strided_slice %27 {offsets = [0, 128], sizes = [16, 128], strides = [1, 1]} : vector<16x256xf32> to vector<16x128xf32>
    %30 = arith.addf %28, %29 : vector<16x128xf32>
    %cst_8 = arith.constant dense<0.000000e+00> : vector<128xf32>
    %31 = vector.multi_reduction <add>, %30, %cst_8 [0] : vector<16x128xf32> to vector<128xf32>
    %32 = vector.shape_cast %31 : vector<128xf32> to vector<1x128xf32>
    %cst_9 = arith.constant 0.899999976 : f32
    %33 = vector.broadcast %cst_9 : f32 to vector<1x128xf32>
    %34 = arith.mulf %33, %32 : vector<1x128xf32>
    %35 = arith.addf %19, %34 : vector<1x128xf32>
    %c0_10 = arith.constant 0 : index
    %c0_11 = arith.constant 0 : index
    %c0_12 = arith.constant 0 : index
    %36 = vector.load %arg4[%c0_10, %c0_11, %c0_12] : memref<1x1x128xf32, #tpu.memory_space<vmem>>, vector<1x1x128xf32>
    %37 = vector.shape_cast %35 : vector<1x128xf32> to vector<1x1x128xf32>
    %38 = arith.subf %36, %37 : vector<1x1x128xf32>
    %c0_13 = arith.constant 0 : index
    %c0_14 = arith.constant 0 : index
    %c0_15 = arith.constant 0 : index
    %39 = vector.load %arg4[%c0_13, %c0_14, %c0_15] : memref<1x1x128xf32, #tpu.memory_space<vmem>>, vector<1x1x128xf32>
    tpu.vector_store %arg4[%c0_13, %c0_14, %c0_15], %38 {strides = array<i32>} : memref<1x1x128xf32, #tpu.memory_space<vmem>>, vector<1x1x128xf32>,
    return
  }
  func.func @transform_0(%arg0: i32, %arg1: i32) -> (i32, i32) {
    %c0_i32 = arith.constant 0 : i32
    return %arg0, %arg1 : i32, i32
  }
  func.func @transform_1(%arg0: i32, %arg1: i32) -> (i32, i32) {
    %c0_i32 = arith.constant 0 : i32
    %c0_i32_0 = arith.constant 0 : i32
    return %arg0, %c0_i32 : i32, i32
  }
  func.func @transform_2(%arg0: i32, %arg1: i32) -> (i32, i32, i32) {
    %c0_i32 = arith.constant 0 : i32
    %c0_i32_0 = arith.constant 0 : i32
    %c0_i32_1 = arith.constant 0 : i32
    return %arg0, %c0_i32, %c0_i32_0 : i32, i32, i32
  }
}

</mosaic_0001>

<llo_original>
// kernel: label_smoothing_loss.1
$region0: #{label_smoothing_loss.1}
  #allocation0 [shape = 'u32[]', space=smem, size = 0x4, offset = 0x4, fixed_abs, tag = 'smem constant byte address 0x4 - core index']
  #allocation1 [shape = 'u32[144,128]{1,0:T(1,128)}', space=vmem, size = 0x12000, scoped, tag = 'internal scratch']
  %s0 = inlined_call_operand.hbm [shape: f32[16,256], index: 0, kind: input, shape index: {}]
  %s1 = inlined_call_operand.vmem [shape: s32[16,1], index: 1, kind: input, shape index: {}]
  %s2 = inlined_call_operand.vmem [shape: f32[1,1,128], index: 2, kind: output, shape index: {}]
  %s3 = sld [smem:[#allocation0]]
  $region26: #{label_smoothing_loss.1} parent=0
    _
  %s5 = ssub.s32 1, %s3
  %s6 = scalar_select 0, %s5, %s3
  $region1: #{label_smoothing_loss.1} parent=0
    #allocation2 [shape = 'u8[16384]{0}', space=vmem, size = 0x4000, scoped, tag = 'input window, operand 0, single buffered']
    #allocation3 [shape = 's32[1]{0}', space=sflag, size = 0x4, scoped, tag = 'scoped memory for label_smoothing_loss.1']
    %7 = vsyncpa [#allocation3], 0
    // Predicated region
    $region2: #{label_smoothing_loss.1} parent=1 // pred_check
      _
    $region3: #{label_smoothing_loss.1} parent=1 // pred_check_branch
      %9 = sbr.rel (0) target = $region5
    $region4: #{label_smoothing_loss.1} parent=1 // pred_region
      %s11 = ssub.s32 512, 512
      %12 = vsyncadd [#allocation3], %s11
      %s13 = sshll.u32 [#allocation2], 4
      %s14 = int_to_ptr.vmem [resolvable:$true] %s13
      %19 = dma.hbm_to_vmem [thread:$0]  %s0, 512, %s14, [#allocation3], 256, 256, 16
    $region5: #{label_smoothing_loss.1} parent=1 // pred_fallthru
      _
    // Predicated region
    $region6: #{label_smoothing_loss.1} parent=1 // pred_check
      _
    $region7: #{label_smoothing_loss.1} parent=1 // pred_check_branch
      %21 = sbr.rel (0) target = $region9
    $region8: #{label_smoothing_loss.1} parent=1 // pred_region
      _
    $region9: #{label_smoothing_loss.1} parent=1 // pred_fallthru
      _
    // Predicated region
    $region10: #{label_smoothing_loss.1} parent=1 // pred_check
      _
    $region11: #{label_smoothing_loss.1} parent=1 // pred_check_branch
      %23 = sbr.rel (0) target = $region13
    $region12: #{label_smoothing_loss.1} parent=1 // pred_region
      %24 = dma.done [#allocation3], 512
    $region13: #{label_smoothing_loss.1} parent=1 // pred_fallthru
      _
    %p25 = scmp.eq.s32.totalorder 0, 0
    // Predicated region
    $region14: #{label_smoothing_loss.1} parent=1 // pred_check
      %p26 = pneg %p25
    $region15: #{label_smoothing_loss.1} parent=1 // pred_check_branch
      %28 = sbr.rel (%p26) target = $region17
    $region16: #{label_smoothing_loss.1} parent=1 // pred_region
      %29 = vst [vmem:[%s2] sm:$0x1] 0.0
    $region17: #{label_smoothing_loss.1} parent=1 // pred_fallthru
      _
    %v30 = vld [vmem:[%s1] sm:$0xff]
    %v31 = vld [vmem:[%s1 + $0x8] sm:$0xff]
    %v32 = vld [vmem:[#allocation2] sm:$0xff]
    %v33 = vld [vmem:[#allocation2 + $0x8] sm:$0xff]
    %v34 = vld [vmem:[#allocation2 + $0x10] sm:$0xff]
    %v35 = vld [vmem:[#allocation2 + $0x18] sm:$0xff]
    %v36 = vlog2.pop %v32
    %v37 = vmul.f32 %v36, 0.6931472
    %v38 = vlog2.pop %v33
    %v39 = vmul.f32 %v38, 0.6931472
    %v40 = vlog2.pop %v34
    %v41 = vmul.f32 %v40, 0.6931472
    %v42 = vlog2.pop %v35
    %v43 = vmul.f32 %v42, 0.6931472
    %vm44 = vcmp.ne.s32.totalorder %v30, 0
    %vm45 = vcmp.ne.s32.totalorder %v31, 0
    %v46 = vlaneseq
    %v47 = vand.u32 %v46, 127
    %v48 = vadd.s32 %v47, 128
    %v49 = vsel %vm44, 1, 0
    %v50 = vsel %vm45, 1, 0
    %51 = vset.pattern.permute.xlu0 0
    %52 = vperm.xlu0 %51, %v49
    %v53 = vpop.permute.xlu0 %52
    %54 = vset.pattern.permute.xlu0 0
    %55 = vperm.xlu0 %54, %v50
    %v56 = vpop.permute.xlu0 %55
    %vm57 = vcmp.eq.s32.totalorder %v53, 1
    %vm58 = vcmp.eq.s32.totalorder %v56, 1
    %v59 = vsel %vm57, %v37, 0.0
    %v60 = vsel %vm57, %v39, 0.0
    %v61 = vsel %vm58, %v41, 0.0
    %v62 = vsel %vm58, %v43, 0.0
    %v63 = vadd.f32 %v59, %v60
    %v64 = vadd.f32 %v61, %v62
    %v65 = vadd.f32 %v63, %v64
    %v66 = vrot.slane %v65, 4
    %v67 = vadd.f32 %v65, %v66
    %v68 = vrot.slane %v67, 2
    %v69 = vadd.f32 %v67, %v68
    %v70 = vrot.slane %v69, 1
    %v71 = vadd.f32 %v69, %v70
    %v72 = vmul.f32 %v71, 0.000390625
    %s73 = smul.u32 0, 256
    %v74 = vstv %s73
    %v75 = vsub.s32 %v30, %v74
    %v76 = vsub.s32 %v31, %v74
    %77 = vset.pattern.permute.xlu0 0
    %78 = vperm.xlu0 %77, %v75
    %v79 = vpop.permute.xlu0 %78
    %80 = vset.pattern.permute.xlu0 0
    %81 = vperm.xlu0 %80, %v76
    %v82 = vpop.permute.xlu0 %81
    %vm83 = vcmp.eq.s32.totalorder %v47, %v79
    %vm84 = vcmp.eq.s32.totalorder %v48, %v79
    %vm85 = vcmp.eq.s32.totalorder %v47, %v82
    %vm86 = vcmp.eq.s32.totalorder %v48, %v82
    %v87 = vsel %vm83, %v59, 0.0
    %v88 = vsel %vm84, %v60, 0.0
    %v89 = vsel %vm85, %v61, 0.0
    %v90 = vsel %vm86, %v62, 0.0
    %v91 = vadd.f32 %v87, %v88
    %v92 = vadd.f32 %v89, %v90
    %v93 = vadd.f32 %v91, %v92
    %v94 = vrot.slane %v93, 4
    %v95 = vadd.f32 %v93, %v94
    %v96 = vrot.slane %v95, 2
    %v97 = vadd.f32 %v95, %v96
    %v98 = vrot.slane %v97, 1
    %v99 = vadd.f32 %v97, %v98
    %v100 = vmul.f32 %v99, 0.9
    %v101 = vadd.f32 %v72, %v100
    %v102 = vld [vmem:[%s2] sm:$0x1]
    %v103 = vsub.f32 %v102, %v101
    %104 = vst [vmem:[%s2] sm:$0x1] %v103
    // Predicated region
    $region18: #{label_smoothing_loss.1} parent=1 // pred_check
      _
    $region19: #{label_smoothing_loss.1} parent=1 // pred_check_branch
      %106 = sbr.rel (0) target = $region21
    $region20: #{label_smoothing_loss.1} parent=1 // pred_region
      _
    $region21: #{label_smoothing_loss.1} parent=1 // pred_fallthru
      _
    // Predicated region
    $region22: #{label_smoothing_loss.1} parent=1 // pred_check
      _
    $region23: #{label_smoothing_loss.1} parent=1 // pred_check_branch
      %108 = sbr.rel (0) target = $region25
    $region24: #{label_smoothing_loss.1} parent=1 // pred_region
      _
    $region25: #{label_smoothing_loss.1} parent=1 // pred_fallthru
      _
    %109 = vsyncpa [#allocation3], 1

</llo_original>
